<compile_context>
chip_gen: v6e
topology: v6e:2x2x1
jax: 0.10.0
libtpu: 0.0.40
codegen_flags: <defaults>
</compile_context>

<pallas_src>
import functools

import jax
import jax.numpy as jnp
from jax.experimental import pallas as pl
from jax.experimental.pallas import tpu as pltpu

EPS_LN = 1e-5   # torch.nn.LayerNorm default eps
EPS_BN = 1e-5   # torch.nn.BatchNorm1d default eps


# --------------------------------- kernel ---------------------------------- #

def _fused_kernel(slab_ref, w_ref, head_ref, state_ref, small_ref, xa_ref,
                  *, FX, FY, H, OUT):
    """Entire CustomBatchedDropLSTM forward (eval mode) in one kernel.

    slab_ref : (B, FX+2FY+2LH) f32  [x | y | best_y | h_0 c_0 | h_1 c_1 | ...]
    w_ref    : (L, Kmax, 4H) bf16   merged [Wx^T;Wh^T], BN scale + g-gate x2
               folded in, zero-padded rows up to Kmax.
    head_ref : (H+1, OUT) f32       [h2o weight^T ; h2o bias]
    state_ref: (B, 2LH) f32 out     [h_0 c_0 | h_1 c_1 | ...]   (lane-dense)
    small_ref: (B, OUT+FY) f32 out  [h2o output | new best_y]
    xa_ref   : (B, Kmax) f32 VMEM scratch (per-layer matmul operand)
    """
    f32 = jnp.float32
    bf16 = jnp.bfloat16
    num_layers = w_ref.shape[0]
    kmax = xa_ref.shape[1]
    S0 = FX + 2 * FY          # lane offset of the per-layer (h, c) state block
    D0 = S0 + H               # layer-0 matmul contraction width

    # ---- best_y = min(best_y, y) ----
    yv = slab_ref[:, FX:FX + FY].astype(f32)
    by_new = jnp.minimum(slab_ref[:, FX + FY:S0].astype(f32), yv)

    # ---- LayerNorm(x): fresh nn.LayerNorm every forward => weight=1, bias=0 ----
    xv = slab_ref[:, 0:FX].astype(f32)
    mu = jnp.mean(xv, axis=-1, keepdims=True)
    var = jnp.mean(jnp.square(xv - mu), axis=-1, keepdims=True)
    x_ln = (xv - mu) * jax.lax.rsqrt(var + EPS_LN)

    # Zero padding lanes once so zero-padded weight rows never multiply
    # uninitialized VMEM (only traced when some layer width < Kmax).
    if kmax > D0 or kmax > 2 * H:
        xa_ref[...] = jnp.zeros(xa_ref.shape, xa_ref.dtype)

    h_prev = None
    for l in range(num_layers):                      # static (trace-time) loop
        off = S0 + 2 * l * H
        if l == 0:
            # layer-0 input [LayerNorm(x) | y | best_y_new | h_0], assembled by
            # static lane-range stores (no jnp.concatenate on the MXU path).
            xa_ref[:, 0:FX] = x_ln
            xa_ref[:, FX:FX + FY] = yv
            xa_ref[:, FX + FY:S0] = by_new
            xa_ref[:, S0:D0] = slab_ref[:, off:off + H].astype(f32)
        else:
            # layer-l input [h_{l-1} | h_l]; eval-mode dropout on h is identity.
            xa_ref[:, 0:H] = h_prev
            xa_ref[:, H:2 * H] = slab_ref[:, off:off + H].astype(f32)
        c_prev = slab_ref[:, off + H:off + 2 * H].astype(f32)

        # Merged Wx/Wh matmul: bf16 operands -> single-pass MXU, f32 accumulate.
        gates = jnp.dot(xa_ref[...].astype(bf16), w_ref[l],
                        preferred_element_type=f32)            # (B, 4H)

        # One sigmoid sweep over all 4H lanes.  Gate order (f, i, o, g) matches
        # gates.chunk(4, 1) in the PyTorch module.  The g columns of W carry a
        # folded factor 2, so tanh(z) = 2*sigmoid(2z) - 1 comes from the same
        # EUP sweep (no second transcendental pass, no iota/select).
        act = jax.nn.sigmoid(gates)
        f = act[:, 0:H]
        i = act[:, H:2 * H]
        o = act[:, 2 * H:3 * H]
        g = 2.0 * act[:, 3 * H:4 * H] - 1.0
        c_next = f * c_prev + i * g
        h_next = o * jnp.tanh(c_next)

        state_ref[:, 2 * l * H:(2 * l + 1) * H] = h_next.astype(state_ref.dtype)
        state_ref[:, (2 * l + 1) * H:(2 * l + 2) * H] = c_next.astype(state_ref.dtype)
        h_prev = h_next

    # ---- output head, packed next to best_y (one small writeback DMA) ----
    out = (jnp.dot(h_prev, head_ref[0:H, :].astype(f32),
                   preferred_element_type=f32)
           + head_ref[H:H + 1, :].astype(f32))
    small_ref[:, 0:OUT] = out.astype(small_ref.dtype)
    small_ref[:, OUT:OUT + FY] = by_new.astype(small_ref.dtype)


# ------------------------------ pallas wrapper ------------------------------ #

def custom_batched_drop_lstm_forward(params, x, y, best_y, initial_states):
    """Mirrors CustomBatchedDropLSTM.forward (eval mode).

    Returns (output, new_states, best_y_new).  The packed (B, 2LH) state output
    uses the same lane layout as the state segment of the input slab, so a
    time-stepping caller can re-pack it directly for the next call.
    """
    if best_y is None:                    # first call: best_y = y.clone()
        best_y = y
    H = params["hidden_size"]
    OUT = params["output_size"]
    L = params["num_layers"]
    B, FX = x.shape
    FY = y.shape[-1]
    kmax = params["w_packed"].shape[1]

    # One lane-packed state/IO slab -> one input DMA instead of nine.
    pieces = [x, y, best_y]
    for h0, c0 in initial_states:
        pieces += [h0, c0]
    slab = jnp.concatenate(pieces, axis=1).astype(jnp.float32)

    vmem = pl.BlockSpec(memory_space=pltpu.MemorySpace.VMEM)
    kernel = functools.partial(_fused_kernel, FX=FX, FY=FY, H=H, OUT=OUT)
    state, small = pl.pallas_call(
        kernel,
        out_shape=(
            jax.ShapeDtypeStruct((B, 2 * L * H), x.dtype),   # [h|c] per layer
            jax.ShapeDtypeStruct((B, OUT + FY), x.dtype),    # [out | best_y]
        ),
        in_specs=[vmem, vmem, vmem],
        out_specs=(vmem, vmem),
        scratch_shapes=[pltpu.VMEM((B, kmax), jnp.float32)],
    )(slab, params["w_packed"], params["head"])

    out = small[:, :OUT]
    by_new = small[:, OUT:]
    new_states = [(state[:, 2 * l * H:(2 * l + 1) * H],
                   state[:, (2 * l + 1) * H:(2 * l + 2) * H]) for l in range(L)]
    return out, new_states, by_new


# ------------------------------ parameter setup ----------------------------- #

def make_params(key, input_size, hidden_size, output_size, num_layers=2):
    """Random params, pre-packed for the fused kernel.

    Deployed gate weights are bf16.  `w_ref_layers` holds the exact f32 values
    of those bf16 weights (eval-mode BatchNorm scale 1/sqrt(1+eps) folded in)
    for the plain-JAX reference; `w_packed` additionally folds a factor 2 into
    the g-gate columns (tanh(z) = 2*sigmoid(2z) - 1, an exact power-of-2 scale),
    zero-pads every layer's contraction dim to Kmax and stacks them.
    """
    bn_scale = (1.0 + EPS_BN) ** -0.5
    keys = jax.random.split(key, 2 * num_layers + 2)
    w_ref_layers, widths = [], []
    for i in range(num_layers):
        d_in = input_size if i == 0 else hidden_size
        wx = jax.random.normal(keys[2 * i], (4 * hidden_size, d_in),
                               jnp.float32) * 0.1
        wh = jax.random.normal(keys[2 * i + 1], (4 * hidden_size, hidden_size),
                               jnp.float32) * 0.1
        w = jnp.concatenate([wx.T, wh.T], axis=0) * bn_scale      # (d_in+H, 4H)
        w_ref_layers.append(w.astype(jnp.bfloat16).astype(jnp.float32))
        widths.append(d_in + hidden_size)
    kmax = max(widths)
    col_scale = jnp.concatenate(
        [jnp.ones((3 * hidden_size,), jnp.float32),
         jnp.full((hidden_size,), 2.0, jnp.float32)])             # x2 on g gate
    packed = []
    for w in w_ref_layers:
        wp = w * col_scale[None, :]
        if kmax > wp.shape[0]:
            wp = jnp.pad(wp, ((0, kmax - wp.shape[0]), (0, 0)))
        packed.append(wp)
    w_packed = jnp.stack(packed).astype(jnp.bfloat16)             # (L, Kmax, 4H)

    h2o_w = jax.random.normal(keys[-2], (output_size, hidden_size),
                              jnp.float32) * 0.1
    h2o_b = jax.random.normal(keys[-1], (output_size,), jnp.float32) * 0.1
    head = jnp.concatenate([h2o_w.T, h2o_b[None, :]], axis=0)     # (H+1, OUT)
    return {
        "hidden_size": hidden_size,
        "output_size": output_size,
        "num_layers": num_layers,
        "w_packed": w_packed,
        "head": head,
        # f32 views of the same weight values, for the plain-JAX reference:
        "w_ref_layers": w_ref_layers,
        "h2o_w_t": h2o_w.T,
        "h2o_b": h2o_b,
    }


# ---------------------------- plain-JAX reference --------------------------- #

def reference_forward(params, x, y, best_y, initial_states):
    """Plain-JAX mirror of the PyTorch module in eval() mode."""
    if best_y is None:
        best_y = y
    best_y_new = jnp.minimum(best_y, y)
    mu = jnp.mean(x, axis=-1, keepdims=True)
    var = jnp.mean(jnp.square(x - mu), axis=-1, keepdims=True)
    x_ln = (x - mu) / jnp.sqrt(var + EPS_LN)
    cur = jnp.concatenate([x_ln, y, best_y_new], axis=1)
    H = params["hidden_size"]
    new_states = []
    for li in range(params["num_layers"]):
        w = params["w_ref_layers"][li]          # eval-mode BN scale folded in
        h0, c0 = initial_states[li]
        gates = jnp.concatenate([cur, h0], axis=1) @ w
        f = jax.nn.sigmoid(gates[:, 0 * H:1 * H])
        i = jax.nn.sigmoid(gates[:, 1 * H:2 * H])
        o = jax.nn.sigmoid(gates[:, 2 * H:3 * H])
        g = jnp.tanh(gates[:, 3 * H:4 * H])
        c = f * c0 + i * g
        h = o * jnp.tanh(c)
        new_states.append((h, c))
        cur = h
    out = cur @ params["h2o_w_t"] + params["h2o_b"]
    return out, new_states, best_y_new


# ---------------------------------- main ------------------------------------ #

if __name__ == "__main__":
    B, FX, FY = 8, 16, 8                 # x: (B, FX), y: (B, FY)
    HIDDEN, OUT, NUM_LAYERS = 32, 8, 2
    INPUT_SIZE = FX + 2 * FY             # cat(x, y, best_y) along features

    root = jax.random.PRNGKey(0)
    k_param, k_x, k_y, k_h = jax.random.split(root, 4)
    params = make_params(k_param, INPUT_SIZE, HIDDEN, OUT, NUM_LAYERS)

    x = jax.random.normal(k_x, (B, FX), jnp.float32)
    y = jax.random.normal(k_y, (B, FY), jnp.float32)
    state_keys = jax.random.split(k_h, 2 * NUM_LAYERS)
    initial_states = [
        (jax.random.normal(state_keys[2 * i], (B, HIDDEN), jnp.float32),
         jax.random.normal(state_keys[2 * i + 1], (B, HIDDEN), jnp.float32))
        for i in range(NUM_LAYERS)
    ]

    out, new_states, best_y = custom_batched_drop_lstm_forward(
        params, x, y, None, initial_states)
    jax.block_until_ready((out, new_states, best_y))

    assert out.shape == (B, OUT)
    assert best_y.shape == (B, FY)
    assert all(h.shape == (B, HIDDEN) and c.shape == (B, HIDDEN)
               for h, c in new_states)

    # Cross-check against the plain-JAX eval-mode reference.  Tolerance covers
    # bf16 MXU operands (activations cast to bf16 inside the kernel) vs. the
    # f32-activation reference; the weight values themselves are numerically
    # identical bf16 values on both paths.
    ref_out, ref_states, ref_by = reference_forward(
        params, x, y, None, initial_states)
    assert jnp.allclose(best_y, ref_by, atol=1e-6)
    assert jnp.allclose(out, ref_out, atol=1e-2, rtol=1e-2)
    for (h, c), (rh, rc) in zip(new_states, ref_states):
        assert jnp.allclose(h, rh, atol=1e-2, rtol=1e-2)
        assert jnp.allclose(c, rc, atol=1e-2, rtol=1e-2)

    print("KERNEL_OK")
</pallas_src>

<mosaic_0001>
module attributes {stable_mosaic.version = 11 : i64} {
  func.func @_fused_kernel(%arg0: memref<8x160xf32, #tpu.memory_space<vmem>>, %arg1: memref<2x64x128xbf16, #tpu.memory_space<vmem>>, %arg2: memref<33x8xf32, #tpu.memory_space<vmem>>, %arg3: memref<8x128xf32, #tpu.memory_space<vmem>>, %arg4: memref<8x16xf32, #tpu.memory_space<vmem>>, %arg5: memref<8x64xf32, #tpu.memory_space<vmem>>) attributes {dimension_semantics = [], scalar_prefetch = 0 : i64, scratch_operands = 1 : i64, tpu.core_type = #tpu.core_type<tc>} {
    %c0 = arith.constant 0 : index
    %c16 = arith.constant 16 : index
    %0 = vector.load %arg0[%c0, %c16] : memref<8x160xf32, #tpu.memory_space<vmem>>, vector<8x8xf32>
    %c0_0 = arith.constant 0 : index
    %c24 = arith.constant 24 : index
    %1 = vector.load %arg0[%c0_0, %c24] : memref<8x160xf32, #tpu.memory_space<vmem>>, vector<8x8xf32>
    %2 = arith.minimumf %1, %0 : vector<8x8xf32>
    %c0_1 = arith.constant 0 : index
    %c0_2 = arith.constant 0 : index
    %3 = vector.load %arg0[%c0_1, %c0_2] : memref<8x160xf32, #tpu.memory_space<vmem>>, vector<8x16xf32>
    %cst = arith.constant dense<0.000000e+00> : vector<8xf32>
    %4 = vector.multi_reduction <add>, %3, %cst [1] : vector<8x16xf32> to vector<8xf32>
    %5 = vector.shape_cast %4 : vector<8xf32> to vector<8x1xf32>
    %cst_3 = arith.constant 1.600000e+01 : f32
    %6 = vector.broadcast %cst_3 : f32 to vector<8x1xf32>
    %7 = arith.divf %5, %6 : vector<8x1xf32>
    %8 = vector.broadcast %7 : vector<8x1xf32> to vector<8x16xf32>
    %9 = arith.subf %3, %8 : vector<8x16xf32>
    %10 = arith.mulf %9, %9 : vector<8x16xf32>
    %cst_4 = arith.constant dense<0.000000e+00> : vector<8xf32>
    %11 = vector.multi_reduction <add>, %10, %cst_4 [1] : vector<8x16xf32> to vector<8xf32>
    %12 = vector.shape_cast %11 : vector<8xf32> to vector<8x1xf32>
    %cst_5 = arith.constant 1.600000e+01 : f32
    %13 = vector.broadcast %cst_5 : f32 to vector<8x1xf32>
    %14 = arith.divf %12, %13 : vector<8x1xf32>
    %15 = vector.broadcast %7 : vector<8x1xf32> to vector<8x16xf32>
    %16 = arith.subf %3, %15 : vector<8x16xf32>
    %cst_6 = arith.constant 9.99999974E-6 : f32
    %17 = vector.broadcast %cst_6 : f32 to vector<8x1xf32>
    %18 = arith.addf %14, %17 : vector<8x1xf32>
    %19 = math.rsqrt %18 : vector<8x1xf32>
    %20 = vector.broadcast %19 : vector<8x1xf32> to vector<8x16xf32>
    %21 = arith.mulf %16, %20 : vector<8x16xf32>
    %c0_7 = arith.constant 0 : index
    %c0_8 = arith.constant 0 : index
    %22 = vector.load %arg5[%c0_7, %c0_8] : memref<8x64xf32, #tpu.memory_space<vmem>>, vector<8x16xf32>
    tpu.vector_store %arg5[%c0_7, %c0_8], %21 {strides = array<i32>} : memref<8x64xf32, #tpu.memory_space<vmem>>, vector<8x16xf32>,
    %c0_9 = arith.constant 0 : index
    %c16_10 = arith.constant 16 : index
    %23 = vector.load %arg5[%c0_9, %c16_10] : memref<8x64xf32, #tpu.memory_space<vmem>>, vector<8x8xf32>
    tpu.vector_store %arg5[%c0_9, %c16_10], %0 {strides = array<i32>} : memref<8x64xf32, #tpu.memory_space<vmem>>, vector<8x8xf32>,
    %c0_11 = arith.constant 0 : index
    %c24_12 = arith.constant 24 : index
    %24 = vector.load %arg5[%c0_11, %c24_12] : memref<8x64xf32, #tpu.memory_space<vmem>>, vector<8x8xf32>
    tpu.vector_store %arg5[%c0_11, %c24_12], %2 {strides = array<i32>} : memref<8x64xf32, #tpu.memory_space<vmem>>, vector<8x8xf32>,
    %c0_13 = arith.constant 0 : index
    %c32 = arith.constant 32 : index
    %25 = vector.load %arg0[%c0_13, %c32] : memref<8x160xf32, #tpu.memory_space<vmem>>, vector<8x32xf32>
    %c0_14 = arith.constant 0 : index
    %c32_15 = arith.constant 32 : index
    %26 = vector.load %arg5[%c0_14, %c32_15] : memref<8x64xf32, #tpu.memory_space<vmem>>, vector<8x32xf32>
    tpu.vector_store %arg5[%c0_14, %c32_15], %25 {strides = array<i32>} : memref<8x64xf32, #tpu.memory_space<vmem>>, vector<8x32xf32>,
    %c0_16 = arith.constant 0 : index
    %c64 = arith.constant 64 : index
    %27 = vector.load %arg0[%c0_16, %c64] : memref<8x160xf32, #tpu.memory_space<vmem>>, vector<8x32xf32>
    %c0_17 = arith.constant 0 : index
    %c0_18 = arith.constant 0 : index
    %28 = vector.load %arg5[%c0_17, %c0_18] : memref<8x64xf32, #tpu.memory_space<vmem>>, vector<8x64xf32>
    %29 = arith.truncf %28 : vector<8x64xf32> to vector<8x64xbf16>
    %c0_19 = arith.constant 0 : index
    %c0_20 = arith.constant 0 : index
    %c0_21 = arith.constant 0 : index
    %30 = vector.load %arg1[%c0_19, %c0_20, %c0_21] : memref<2x64x128xbf16, #tpu.memory_space<vmem>>, vector<1x64x128xbf16>
    %31 = vector.shape_cast %30 : vector<1x64x128xbf16> to vector<64x128xbf16>
    %cst_22 = arith.constant dense<0.000000e+00> : vector<8x128xf32>
    %32 = tpu.matmul %29, %31, %cst_22 {dimension_numbers = #tpu.dot_dimension_numbers<[1], [0], [0], [1], [0, 0, 1, 1], [], []>} : vector<8x64xbf16>, vector<64x128xbf16>, vector<8x128xf32> -> vector<8x128xf32>
    %33 = arith.negf %32 : vector<8x128xf32>
    %34 = math.exp %33 : vector<8x128xf32>
    %cst_23 = arith.constant 1.000000e+00 : f32
    %35 = vector.broadcast %cst_23 : f32 to vector<8x128xf32>
    %36 = arith.addf %35, %34 : vector<8x128xf32>
    %37 = arith.divf %35, %36 : vector<8x128xf32>
    %38 = vector.extract_strided_slice %37 {offsets = [0, 0], sizes = [8, 32], strides = [1, 1]} : vector<8x128xf32> to vector<8x32xf32>
    %39 = vector.extract_strided_slice %37 {offsets = [0, 32], sizes = [8, 32], strides = [1, 1]} : vector<8x128xf32> to vector<8x32xf32>
    %40 = vector.extract_strided_slice %37 {offsets = [0, 64], sizes = [8, 32], strides = [1, 1]} : vector<8x128xf32> to vector<8x32xf32>
    %41 = vector.extract_strided_slice %37 {offsets = [0, 96], sizes = [8, 32], strides = [1, 1]} : vector<8x128xf32> to vector<8x32xf32>
    %cst_24 = arith.constant 2.000000e+00 : f32
    %42 = vector.broadcast %cst_24 : f32 to vector<8x32xf32>
    %43 = arith.mulf %42, %41 : vector<8x32xf32>
    %cst_25 = arith.constant 1.000000e+00 : f32
    %44 = vector.broadcast %cst_25 : f32 to vector<8x32xf32>
    %45 = arith.subf %43, %44 : vector<8x32xf32>
    %46 = arith.mulf %38, %27 : vector<8x32xf32>
    %47 = arith.mulf %39, %45 : vector<8x32xf32>
    %48 = arith.addf %46, %47 : vector<8x32xf32>
    %49 = math.tanh %48 : vector<8x32xf32>
    %50 = arith.mulf %40, %49 : vector<8x32xf32>
    %c0_26 = arith.constant 0 : index
    %c0_27 = arith.constant 0 : index
    %51 = vector.load %arg3[%c0_26, %c0_27] : memref<8x128xf32, #tpu.memory_space<vmem>>, vector<8x32xf32>
    tpu.vector_store %arg3[%c0_26, %c0_27], %50 {strides = array<i32>} : memref<8x128xf32, #tpu.memory_space<vmem>>, vector<8x32xf32>,
    %c0_28 = arith.constant 0 : index
    %c32_29 = arith.constant 32 : index
    %52 = vector.load %arg3[%c0_28, %c32_29] : memref<8x128xf32, #tpu.memory_space<vmem>>, vector<8x32xf32>
    tpu.vector_store %arg3[%c0_28, %c32_29], %48 {strides = array<i32>} : memref<8x128xf32, #tpu.memory_space<vmem>>, vector<8x32xf32>,
    %c0_30 = arith.constant 0 : index
    %c0_31 = arith.constant 0 : index
    %53 = vector.load %arg5[%c0_30, %c0_31] : memref<8x64xf32, #tpu.memory_space<vmem>>, vector<8x32xf32>
    tpu.vector_store %arg5[%c0_30, %c0_31], %50 {strides = array<i32>} : memref<8x64xf32, #tpu.memory_space<vmem>>, vector<8x32xf32>,
    %c0_32 = arith.constant 0 : index
    %c96 = arith.constant 96 : index
    %54 = vector.load %arg0[%c0_32, %c96] : memref<8x160xf32, #tpu.memory_space<vmem>>, vector<8x32xf32>
    %c0_33 = arith.constant 0 : index
    %c32_34 = arith.constant 32 : index
    %55 = vector.load %arg5[%c0_33, %c32_34] : memref<8x64xf32, #tpu.memory_space<vmem>>, vector<8x32xf32>
    tpu.vector_store %arg5[%c0_33, %c32_34], %54 {strides = array<i32>} : memref<8x64xf32, #tpu.memory_space<vmem>>, vector<8x32xf32>,
    %c0_35 = arith.constant 0 : index
    %c128 = arith.constant 128 : index
    %56 = vector.load %arg0[%c0_35, %c128] : memref<8x160xf32, #tpu.memory_space<vmem>>, vector<8x32xf32>
    %c0_36 = arith.constant 0 : index
    %c0_37 = arith.constant 0 : index
    %57 = vector.load %arg5[%c0_36, %c0_37] : memref<8x64xf32, #tpu.memory_space<vmem>>, vector<8x64xf32>
    %58 = arith.truncf %57 : vector<8x64xf32> to vector<8x64xbf16>
    %c1 = arith.constant 1 : index
    %c0_38 = arith.constant 0 : index
    %c0_39 = arith.constant 0 : index
    %59 = vector.load %arg1[%c1, %c0_38, %c0_39] : memref<2x64x128xbf16, #tpu.memory_space<vmem>>, vector<1x64x128xbf16>
    %60 = vector.shape_cast %59 : vector<1x64x128xbf16> to vector<64x128xbf16>
    %cst_40 = arith.constant dense<0.000000e+00> : vector<8x128xf32>
    %61 = tpu.matmul %58, %60, %cst_40 {dimension_numbers = #tpu.dot_dimension_numbers<[1], [0], [0], [1], [0, 0, 1, 1], [], []>} : vector<8x64xbf16>, vector<64x128xbf16>, vector<8x128xf32> -> vector<8x128xf32>
    %62 = arith.negf %61 : vector<8x128xf32>
    %63 = math.exp %62 : vector<8x128xf32>
    %cst_41 = arith.constant 1.000000e+00 : f32
    %64 = vector.broadcast %cst_41 : f32 to vector<8x128xf32>
    %65 = arith.addf %64, %63 : vector<8x128xf32>
    %66 = arith.divf %64, %65 : vector<8x128xf32>
    %67 = vector.extract_strided_slice %66 {offsets = [0, 0], sizes = [8, 32], strides = [1, 1]} : vector<8x128xf32> to vector<8x32xf32>
    %68 = vector.extract_strided_slice %66 {offsets = [0, 32], sizes = [8, 32], strides = [1, 1]} : vector<8x128xf32> to vector<8x32xf32>
    %69 = vector.extract_strided_slice %66 {offsets = [0, 64], sizes = [8, 32], strides = [1, 1]} : vector<8x128xf32> to vector<8x32xf32>
    %70 = vector.extract_strided_slice %66 {offsets = [0, 96], sizes = [8, 32], strides = [1, 1]} : vector<8x128xf32> to vector<8x32xf32>
    %cst_42 = arith.constant 2.000000e+00 : f32
    %71 = vector.broadcast %cst_42 : f32 to vector<8x32xf32>
    %72 = arith.mulf %71, %70 : vector<8x32xf32>
    %cst_43 = arith.constant 1.000000e+00 : f32
    %73 = vector.broadcast %cst_43 : f32 to vector<8x32xf32>
    %74 = arith.subf %72, %73 : vector<8x32xf32>
    %75 = arith.mulf %67, %56 : vector<8x32xf32>
    %76 = arith.mulf %68, %74 : vector<8x32xf32>
    %77 = arith.addf %75, %76 : vector<8x32xf32>
    %78 = math.tanh %77 : vector<8x32xf32>
    %79 = arith.mulf %69, %78 : vector<8x32xf32>
    %c0_44 = arith.constant 0 : index
    %c64_45 = arith.constant 64 : index
    %80 = vector.load %arg3[%c0_44, %c64_45] : memref<8x128xf32, #tpu.memory_space<vmem>>, vector<8x32xf32>
    tpu.vector_store %arg3[%c0_44, %c64_45], %79 {strides = array<i32>} : memref<8x128xf32, #tpu.memory_space<vmem>>, vector<8x32xf32>,
    %c0_46 = arith.constant 0 : index
    %c96_47 = arith.constant 96 : index
    %81 = vector.load %arg3[%c0_46, %c96_47] : memref<8x128xf32, #tpu.memory_space<vmem>>, vector<8x32xf32>
    tpu.vector_store %arg3[%c0_46, %c96_47], %77 {strides = array<i32>} : memref<8x128xf32, #tpu.memory_space<vmem>>, vector<8x32xf32>,
    %c0_48 = arith.constant 0 : index
    %c0_49 = arith.constant 0 : index
    %82 = vector.load %arg2[%c0_48, %c0_49] : memref<33x8xf32, #tpu.memory_space<vmem>>, vector<32x8xf32>
    %cst_50 = arith.constant dense<0.000000e+00> : vector<8x8xf32>
    %83 = tpu.matmul %79, %82, %cst_50 {dimension_numbers = #tpu.dot_dimension_numbers<[1], [0], [0], [1], [0, 0, 1, 1], [], []>} : vector<8x32xf32>, vector<32x8xf32>, vector<8x8xf32> -> vector<8x8xf32>
    %c32_51 = arith.constant 32 : index
    %c0_52 = arith.constant 0 : index
    %84 = vector.load %arg2[%c32_51, %c0_52] : memref<33x8xf32, #tpu.memory_space<vmem>>, vector<1x8xf32>
    %85 = vector.broadcast %84 : vector<1x8xf32> to vector<8x8xf32>
    %86 = arith.addf %83, %85 : vector<8x8xf32>
    %c0_53 = arith.constant 0 : index
    %c0_54 = arith.constant 0 : index
    %87 = vector.load %arg4[%c0_53, %c0_54] : memref<8x16xf32, #tpu.memory_space<vmem>>, vector<8x8xf32>
    tpu.vector_store %arg4[%c0_53, %c0_54], %86 {strides = array<i32>} : memref<8x16xf32, #tpu.memory_space<vmem>>, vector<8x8xf32>,
    %c0_55 = arith.constant 0 : index
    %c8 = arith.constant 8 : index
    %88 = vector.load %arg4[%c0_55, %c8] : memref<8x16xf32, #tpu.memory_space<vmem>>, vector<8x8xf32>
    tpu.vector_store %arg4[%c0_55, %c8], %2 {strides = array<i32>} : memref<8x16xf32, #tpu.memory_space<vmem>>, vector<8x8xf32>,
    return
  }
}

</mosaic_0001>

<llo_original>
// kernel: tpu_custom_call.1
$region0: #{tpu_custom_call.1}
  #allocation0 [shape = 'u32[]', space=smem, size = 0x4, offset = 0x4, fixed_abs, tag = 'smem constant byte address 0x4 - core index']
  #allocation1 [shape = 'u32[144,128]{1,0:T(1,128)}', space=vmem, size = 0x12000, scoped, tag = 'internal scratch']
  #allocation2 [shape = 'f32[8,64]{1,0:T(8,128)}', space=vmem, size = 0x1000, scoped, tag = 'scratch operand']
  %s0 = inlined_call_operand.vmem [shape: f32[8,160], index: 0, kind: input, shape index: {}]
  %s1 = inlined_call_operand.hbm [shape: bf16[2,64,128], index: 1, kind: input, shape index: {}]
  %s2 = inlined_call_operand.vmem [shape: f32[33,8], index: 2, kind: input, shape index: {}]
  %s3 = inlined_call_operand.hbm [shape: f32[8,128], index: 3, kind: output, shape index: {0}]
  %s4 = inlined_call_operand.hbm [shape: f32[8,16], index: 4, kind: output, shape index: {1}]
  %5 = xla_tuple %s3, %s4
  %s6 = sld [smem:[#allocation0]]
  $region34: #{tpu_custom_call.1} parent=0
    _
  %s8 = ssub.s32 1, %s6
  %s9 = scalar_select 0, %s8, %s6
  $region1: #{tpu_custom_call.1} parent=0
    #allocation3 [shape = 'u8[32768]{0}', space=vmem, size = 0x8000, scoped, tag = 'input window, operand 1, single buffered']
    #allocation4 [shape = 's32[1]{0}', space=sflag, size = 0x4, scoped, tag = 'scoped memory for tpu_custom_call.1']
    #allocation5 [shape = 's32[1]{0}', space=sflag, size = 0x4, scoped, tag = 'scoped memory for tpu_custom_call.1']
    #allocation6 [shape = 'u8[4096]{0}', space=vmem, size = 0x1000, scoped, tag = 'output window, operand 0, single buffered']
    #allocation7 [shape = 'u8[4096]{0}', space=vmem, size = 0x1000, scoped, tag = 'output window, operand 1, single buffered']
    #allocation8 [shape = 's32[1]{0}', space=sflag, size = 0x4, scoped, tag = 'scoped memory for tpu_custom_call.1']
    %10 = vsyncpa [#allocation4], 0
    %11 = vsyncpa [#allocation5], 0
    %12 = vsyncpa [#allocation8], 0
    // Predicated region
    $region2: #{tpu_custom_call.1} parent=1 // pred_check
      _
    $region3: #{tpu_custom_call.1} parent=1 // pred_check_branch
      %14 = sbr.rel (0) target = $region5
    $region4: #{tpu_custom_call.1} parent=1 // pred_region
      _
    $region5: #{tpu_custom_call.1} parent=1 // pred_fallthru
      _
    // Predicated region
    $region6: #{tpu_custom_call.1} parent=1 // pred_check
      _
    $region7: #{tpu_custom_call.1} parent=1 // pred_check_branch
      %16 = sbr.rel (0) target = $region9
    $region8: #{tpu_custom_call.1} parent=1 // pred_region
      %s18 = ssub.s32 1024, 1024
      %19 = vsyncadd [#allocation4], %s18
      %s20 = sshll.u32 [#allocation3], 4
      %s21 = int_to_ptr.vmem [resolvable:$true] %s20
      %26 = dma.hbm_to_vmem [thread:$0]  %s1, 1024, %s21, [#allocation4], 64, 64, 4
    $region9: #{tpu_custom_call.1} parent=1 // pred_fallthru
      _
    // Predicated region
    $region10: #{tpu_custom_call.1} parent=1 // pred_check
      _
    $region11: #{tpu_custom_call.1} parent=1 // pred_check_branch
      %28 = sbr.rel (0) target = $region13
    $region12: #{tpu_custom_call.1} parent=1 // pred_region
      _
    $region13: #{tpu_custom_call.1} parent=1 // pred_fallthru
      _
    // Predicated region
    $region14: #{tpu_custom_call.1} parent=1 // pred_check
      _
    $region15: #{tpu_custom_call.1} parent=1 // pred_check_branch
      %30 = sbr.rel (0) target = $region17
    $region16: #{tpu_custom_call.1} parent=1 // pred_region
      %31 = dma.done [#allocation4], 1024
    $region17: #{tpu_custom_call.1} parent=1 // pred_fallthru
      _
    %v33 = vld [vmem:[%s0] sm:$0xff]
    %35 = vrot.lane.b32.xlu0 %v33, 8
    %v36 = vpop.permute.xlu0 %35
    %v38 = vmin.f32 %v33, %v36
    %vm39 = vcmask 130048
    %v40 = vsel %vm39, %v33, 0.0
    %41 = vadd.xlane.f32.xlu0 %v40
    %v42 = vpop.xlane.xlu0 %41
    %v43 = vrcp.pop 16.0
    %v44 = vmul.f32 %v42, %v43
    %v45 = vsub.f32 %v33, %v44
    %v46 = vmul.f32 %v45, %v45
    %v47 = vsel %vm39, %v46, 0.0
    %48 = vadd.xlane.f32.xlu0 %v47
    %v49 = vpop.xlane.xlu0 %48
    %v50 = vmul.f32 %v49, %v43
    %v51 = vadd.f32 %v50, 1e-05
    %v52 = vrsqrt.pop %v51
    %v53 = vmul.f32 %v45, %v52
    %54 = vst.msk [vmem:[#allocation2] sm:$0xff] %vm39, %v53
    %vm55 = vcmask 195712
    %56 = vst.msk [vmem:[#allocation2] sm:$0xff] %vm55, %v33
    %vm57 = vcmask 261312
    %58 = vst.msk [vmem:[#allocation2] sm:$0xff] %vm57, %v38
    %v59 = vld [vmem:[%s0] sm:$0xff]
    %vm60 = vcmask 523520
    %61 = vst.msk [vmem:[#allocation2] sm:$0xff] %vm60, %v59
    %v62 = vld [vmem:[%s0] sm:$0xff]
    %v63 = vld [vmem:[#allocation2] sm:$0xff]
    %v64 = vpack.c.bf16 %v63, %v63
    %v65 = vld [vmem:[#allocation3] sm:$0xf]
    %v66 = vld [vmem:[#allocation3 + $0x4] sm:$0xf]
    %v67 = vld [vmem:[#allocation3 + $0x8] sm:$0xf]
    %v68 = vld [vmem:[#allocation3 + $0xc] sm:$0xf]
    %v69 = vld [vmem:[#allocation3 + $0x10] sm:$0xf]
    %v70 = vld [vmem:[#allocation3 + $0x14] sm:$0xf]
    %v71 = vld [vmem:[#allocation3 + $0x18] sm:$0xf]
    %v72 = vld [vmem:[#allocation3 + $0x1c] sm:$0xf]
    %v81 = vunpack.c.l.b16 %v65
    %v82 = vunpack.c.l.b16 %v66
    %v83 = vunpack.c.l.b16 %v67
    %v84 = vunpack.c.l.b16 %v68
    %v85 = vunpack.c.l.b16 %v69
    %v86 = vunpack.c.l.b16 %v70
    %v87 = vunpack.c.l.b16 %v71
    %v88 = vunpack.c.l.b16 %v72
    %v89 = vpack.c.b16 %v82, %v81
    %v90 = vpack.c.b16 %v84, %v83
    %v91 = vpack.c.b16 %v86, %v85
    %v92 = vpack.c.b16 %v88, %v87
    %vm97 = vcmask 523264
    %v99 = vsel %vm97, %v64, 0
    %101 = vmatprep.subr.bf16.mxu0 0
    %102 = vmatpush1.bf16.msra.mxu0 0
    %103 = vmatprep.subr.bf16.mxu0 0
    %104 = vmatpush1.bf16.msra.mxu0 0
    %105 = vmatprep.subr.bf16.mxu0 0
    %106 = vmatpush1.bf16.msra.mxu0 0
    %107 = vmatprep.subr.bf16.mxu0 0
    %108 = vmatpush1.bf16.msra.mxu0 0
    %109 = vmatprep.subr.bf16.mxu0 0
    %110 = vmatpush1.bf16.msra.mxu0 %v92
    %111 = vmatprep.subr.bf16.mxu0 0
    %112 = vmatpush1.bf16.msra.mxu0 %v91
    %113 = vmatprep.subr.bf16.mxu0 0
    %114 = vmatpush1.bf16.msra.mxu0 %v90
    %115 = vmatprep.subr.bf16.mxu0 0
    %116 = vmatpush1.bf16.msra.mxu0 %v89
    %117 = vmatprep.subr.bf16.mxu0 0
    %118 = vmatpush2.bf16.msra.mxu0 0
    %119 = vmatprep.subr.bf16.mxu0 0
    %120 = vmatpush2.bf16.msra.mxu0 0
    %121 = vmatprep.subr.bf16.mxu0 0
    %122 = vmatpush2.bf16.msra.mxu0 0
    %123 = vmatprep.subr.bf16.mxu0 0
    %124 = vmatpush2.bf16.msra.mxu0 0
    %125 = vmatprep.subr.bf16.mxu0 0
    %126 = vmatpush2.bf16.msra.mxu0 0
    %127 = vmatprep.subr.bf16.mxu0 0
    %128 = vmatpush2.bf16.msra.mxu0 0
    %129 = vmatprep.subr.bf16.mxu0 0
    %130 = vmatpush2.bf16.msra.mxu0 0
    %131 = vmatprep.subr.bf16.mxu0 0
    %132 = vmatpush2.bf16.msra.mxu0 0
    %133 = vmatprep.mubr.bf16.mxu0 0
    %134 = vmatmul.mubr.bf16.gmra.mxu0 %v99
    %v135 = vpop.f32.mrf.mxu0
    %v136 = vadd.f32 0.0, %v135
    %v137 = vpop.f32.mrf.mxu0
    %v138 = vpop.f32.mrf.mxu0
    %v139 = vpop.f32.mrf.mxu0
    %140 = vdwg.mxu0
    %v141 = vxor.u32 %v136, 2147483648
    %v142 = vmul.f32 %v141, 1.442695
    %v143 = vpow.pop %v142
    %v144 = vadd.f32 %v143, 1.0
    %v145 = vrcp.pop %v144
    %v146 = vmul.f32 1.0, %v145
    %v147 = vmul.f32 %v146, 2.0
    %v148 = vsub.f32 %v147, 1.0
    %150 = vrot.lane.b32.xlu0 %v62, 64
    %v151 = vpop.permute.xlu0 %150
    %v153 = vmul.f32 %v146, %v151
    %155 = vrot.lane.b32.xlu0 %v148, 64
    %v156 = vpop.permute.xlu0 %155
    %v158 = vmul.f32 %v146, %v156
    %160 = vrot.lane.b32.xlu0 %v158, 96
    %v161 = vpop.permute.xlu0 %160
    %v163 = vadd.f32 %v153, %v161
    %v164 = vtanh.pop %v163
    %166 = vrot.lane.b32.xlu0 %v164, 64
    %v167 = vpop.permute.xlu0 %166
    %v169 = vmul.f32 %v146, %v167
    %171 = vrot.lane.b32.xlu0 %v169, 64
    %v172 = vpop.permute.xlu0 %171
    %vm174 = vcmask 261120
    %175 = vst.msk [vmem:[#allocation6] sm:$0xff] %vm174, %v172
    %177 = vrot.lane.b32.xlu0 %v163, 32
    %v178 = vpop.permute.xlu0 %177
    %180 = vst.msk [vmem:[#allocation6] sm:$0xff] %vm60, %v178
    %181 = vst.msk [vmem:[#allocation2] sm:$0xff] %vm174, %v172
    %v182 = vld [vmem:[%s0] sm:$0xff]
    %184 = vrot.lane.b32.xlu0 %v182, 64
    %v185 = vpop.permute.xlu0 %184
    %187 = vst.msk [vmem:[#allocation2] sm:$0xff] %vm60, %v185
    %v188 = vld [vmem:[%s0 + $0x8] sm:$0xff]
    %v189 = vld [vmem:[#allocation2] sm:$0xff]
    %v190 = vpack.c.bf16 %v189, %v189
    %s191 = scalar_lea.vmem [#allocation3], 32
    %v192 = vld [vmem:[%s191] sm:$0xf]
    %v193 = vld [vmem:[%s191 + $0x4] sm:$0xf]
    %v194 = vld [vmem:[%s191 + $0x8] sm:$0xf]
    %v195 = vld [vmem:[%s191 + $0xc] sm:$0xf]
    %v196 = vld [vmem:[%s191 + $0x10] sm:$0xf]
    %v197 = vld [vmem:[%s191 + $0x14] sm:$0xf]
    %v198 = vld [vmem:[%s191 + $0x18] sm:$0xf]
    %v199 = vld [vmem:[%s191 + $0x1c] sm:$0xf]
    %v208 = vunpack.c.l.b16 %v192
    %v209 = vunpack.c.l.b16 %v193
    %v210 = vunpack.c.l.b16 %v194
    %v211 = vunpack.c.l.b16 %v195
    %v212 = vunpack.c.l.b16 %v196
    %v213 = vunpack.c.l.b16 %v197
    %v214 = vunpack.c.l.b16 %v198
    %v215 = vunpack.c.l.b16 %v199
    %v216 = vpack.c.b16 %v209, %v208
    %v217 = vpack.c.b16 %v211, %v210
    %v218 = vpack.c.b16 %v213, %v212
    %v219 = vpack.c.b16 %v215, %v214
    %v225 = vsel %vm97, %v190, 0
    %227 = vmatprep.subr.bf16.mxu0 0
    %228 = vmatpush1.bf16.msra.mxu0 0
    %229 = vmatprep.subr.bf16.mxu0 0
    %230 = vmatpush1.bf16.msra.mxu0 0
    %231 = vmatprep.subr.bf16.mxu0 0
    %232 = vmatpush1.bf16.msra.mxu0 0
    %233 = vmatprep.subr.bf16.mxu0 0
    %234 = vmatpush1.bf16.msra.mxu0 0
    %235 = vmatprep.subr.bf16.mxu0 0
    %236 = vmatpush1.bf16.msra.mxu0 %v219
    %237 = vmatprep.subr.bf16.mxu0 0
    %238 = vmatpush1.bf16.msra.mxu0 %v218
    %239 = vmatprep.subr.bf16.mxu0 0
    %240 = vmatpush1.bf16.msra.mxu0 %v217
    %241 = vmatprep.subr.bf16.mxu0 0
    %242 = vmatpush1.bf16.msra.mxu0 %v216
    %243 = vmatprep.subr.bf16.mxu0 0
    %244 = vmatpush2.bf16.msra.mxu0 0
    %245 = vmatprep.subr.bf16.mxu0 0
    %246 = vmatpush2.bf16.msra.mxu0 0
    %247 = vmatprep.subr.bf16.mxu0 0
    %248 = vmatpush2.bf16.msra.mxu0 0
    %249 = vmatprep.subr.bf16.mxu0 0
    %250 = vmatpush2.bf16.msra.mxu0 0
    %251 = vmatprep.subr.bf16.mxu0 0
    %252 = vmatpush2.bf16.msra.mxu0 0
    %253 = vmatprep.subr.bf16.mxu0 0
    %254 = vmatpush2.bf16.msra.mxu0 0
    %255 = vmatprep.subr.bf16.mxu0 0
    %256 = vmatpush2.bf16.msra.mxu0 0
    %257 = vmatprep.subr.bf16.mxu0 0
    %258 = vmatpush2.bf16.msra.mxu0 0
    %259 = vmatprep.mubr.bf16.mxu0 0
    %260 = vmatmul.mubr.bf16.gmra.mxu0 %v225
    %v261 = vpop.f32.mrf.mxu0
    %v262 = vadd.f32 0.0, %v261
    %v263 = vpop.f32.mrf.mxu0
    %v264 = vpop.f32.mrf.mxu0
    %v265 = vpop.f32.mrf.mxu0
    %266 = vdwg.mxu0
    %v267 = vxor.u32 %v262, 2147483648
    %v268 = vmul.f32 %v267, 1.442695
    %v269 = vpow.pop %v268
    %v270 = vadd.f32 %v269, 1.0
    %v271 = vrcp.pop %v270
    %v272 = vmul.f32 1.0, %v271
    %v273 = vmul.f32 %v272, 2.0
    %v274 = vsub.f32 %v273, 1.0
    %v275 = vmul.f32 %v272, %v188
    %277 = vrot.lane.b32.xlu0 %v274, 64
    %v278 = vpop.permute.xlu0 %277
    %v280 = vmul.f32 %v272, %v278
    %282 = vrot.lane.b32.xlu0 %v280, 96
    %v283 = vpop.permute.xlu0 %282
    %v285 = vadd.f32 %v275, %v283
    %v286 = vtanh.pop %v285
    %288 = vrot.lane.b32.xlu0 %v286, 64
    %v289 = vpop.permute.xlu0 %288
    %v291 = vmul.f32 %v272, %v289
    %vm292 = vcmask 785920
    %293 = vst.msk [vmem:[#allocation6] sm:$0xff] %vm292, %v291
    %295 = vrot.lane.b32.xlu0 %v285, 96
    %v296 = vpop.permute.xlu0 %295
    %vm298 = vcmask 1048320
    %299 = vst.msk [vmem:[#allocation6] sm:$0xff] %vm298, %v296
    %v300 = vld [vmem:[%s2] sm:$0xff]
    %v301 = vld [vmem:[%s2 + $0x8] sm:$0xff]
    %v302 = vld [vmem:[%s2 + $0x10] sm:$0xff]
    %v303 = vld [vmem:[%s2 + $0x18] sm:$0xff]
    %v304 = vld [vmem:[%s2 + $0x20] sm:$0x1]
    %v305 = vlaneseq
    %v306 = vshrl.u32 %v305, 7
    %v307 = vsub.s32 0, %v306
    %v308 = vrot.slane %v304, %v307
    %310 = vrot.lane.b32.xlu0 %v291, 64
    %v311 = vpop.permute.xlu0 %310
    %v312 = vsel %vm174, %v311, 0
    %314 = vmatprep.subr.mxu0 0.0
    %315 = vmatpush1.msra.mxu0 0.0
    %316 = vmatprep.subr.mxu0 0.0
    %317 = vmatpush1.msra.mxu0 0.0
    %318 = vmatprep.subr.mxu0 0.0
    %319 = vmatpush1.msra.mxu0 0.0
    %320 = vmatprep.subr.mxu0 0.0
    %321 = vmatpush1.msra.mxu0 0.0
    %322 = vmatprep.subr.mxu0 0.0
    %323 = vmatpush1.msra.mxu0 0.0
    %324 = vmatprep.subr.mxu0 0.0
    %325 = vmatpush1.msra.mxu0 0.0
    %326 = vmatprep.subr.mxu0 0.0
    %327 = vmatpush1.msra.mxu0 0.0
    %328 = vmatprep.subr.mxu0 0.0
    %329 = vmatpush1.msra.mxu0 0.0
    %330 = vmatprep.subr.mxu0 0.0
    %331 = vmatpush1.msra.mxu0 0.0
    %332 = vmatprep.subr.mxu0 0.0
    %333 = vmatpush1.msra.mxu0 0.0
    %334 = vmatprep.subr.mxu0 0.0
    %335 = vmatpush1.msra.mxu0 0.0
    %336 = vmatprep.subr.mxu0 0.0
    %337 = vmatpush1.msra.mxu0 0.0
    %338 = vmatprep.subr.mxu0 0.0
    %339 = vmatpush1.msra.mxu0 %v303
    %340 = vmatprep.subr.mxu0 0.0
    %341 = vmatpush1.msra.mxu0 %v302
    %342 = vmatprep.subr.mxu0 0.0
    %343 = vmatpush1.msra.mxu0 %v301
    %344 = vmatprep.subr.mxu0 0.0
    %345 = vmatpush1.msra.mxu0 %v300
    %346 = vmatprep.subr.mxu0 0.0
    %347 = vmatpush2.msra.mxu0 0.0
    %348 = vmatprep.subr.mxu0 0.0
    %349 = vmatpush2.msra.mxu0 0.0
    %350 = vmatprep.subr.mxu0 0.0
    %351 = vmatpush2.msra.mxu0 0.0
    %352 = vmatprep.subr.mxu0 0.0
    %353 = vmatpush2.msra.mxu0 0.0
    %354 = vmatprep.subr.mxu0 0.0
    %355 = vmatpush2.msra.mxu0 0.0
    %356 = vmatprep.subr.mxu0 0.0
    %357 = vmatpush2.msra.mxu0 0.0
    %358 = vmatprep.subr.mxu0 0.0
    %359 = vmatpush2.msra.mxu0 0.0
    %360 = vmatprep.subr.mxu0 0.0
    %361 = vmatpush2.msra.mxu0 0.0
    %362 = vmatprep.subr.mxu0 0.0
    %363 = vmatpush2.msra.mxu0 0.0
    %364 = vmatprep.subr.mxu0 0.0
    %365 = vmatpush2.msra.mxu0 0.0
    %366 = vmatprep.subr.mxu0 0.0
    %367 = vmatpush2.msra.mxu0 0.0
    %368 = vmatprep.subr.mxu0 0.0
    %369 = vmatpush2.msra.mxu0 0.0
    %370 = vmatprep.subr.mxu0 0.0
    %371 = vmatpush2.msra.mxu0 0.0
    %372 = vmatprep.subr.mxu0 0.0
    %373 = vmatpush2.msra.mxu0 0.0
    %374 = vmatprep.subr.mxu0 0.0
    %375 = vmatpush2.msra.mxu0 0.0
    %376 = vmatprep.subr.mxu0 0.0
    %377 = vmatpush2.msra.mxu0 0.0
    %378 = vmatprep.mubr.f32.mxu0 0.0
    %379 = vmatmul.mubr.f32.gmra.mxu0 %v312
    %v380 = vpop.f32.mrf.mxu0
    %v381 = vadd.f32 %v308, %v380
    %v382 = vpop.f32.mrf.mxu0
    %383 = vdwg.mxu0
    %vm384 = vcmask 64512
    %385 = vst.msk [vmem:[#allocation7] sm:$0xff] %vm384, %v381
    %387 = vrot.lane.b32.xlu0 %v38, 112
    %v388 = vpop.permute.xlu0 %387
    %vm390 = vcmask 130112
    %391 = vst.msk [vmem:[#allocation7] sm:$0xff] %vm390, %v388
    // Predicated region
    $region18: #{tpu_custom_call.1} parent=1 // pred_check
      _
    $region19: #{tpu_custom_call.1} parent=1 // pred_check_branch
      %393 = sbr.rel (0) target = $region21
    $region20: #{tpu_custom_call.1} parent=1 // pred_region
      %s395 = ssub.s32 128, 128
      %396 = vsyncadd [#allocation5], %s395
      %s398 = sshll.u32 [#allocation6], 4
      %s399 = int_to_ptr.vmem [resolvable:$true] %s398
      %401 = dma.vmem_to_hbm [thread:$0]  %s399, 128, %s3, [#allocation5]
    $region21: #{tpu_custom_call.1} parent=1 // pred_fallthru
      _
    // Predicated region
    $region22: #{tpu_custom_call.1} parent=1 // pred_check
      _
    $region23: #{tpu_custom_call.1} parent=1 // pred_check_branch
      %403 = sbr.rel (0) target = $region25
    $region24: #{tpu_custom_call.1} parent=1 // pred_region
      %s405 = ssub.s32 128, 128
      %406 = vsyncadd [#allocation8], %s405
      %s408 = sshll.u32 [#allocation7], 4
      %s409 = int_to_ptr.vmem [resolvable:$true] %s408
      %411 = dma.vmem_to_hbm [thread:$0]  %s409, 128, %s4, [#allocation8]
    $region25: #{tpu_custom_call.1} parent=1 // pred_fallthru
      _
    // Predicated region
    $region26: #{tpu_custom_call.1} parent=1 // pred_check
      _
    $region27: #{tpu_custom_call.1} parent=1 // pred_check_branch
      %413 = sbr.rel (0) target = $region29
    $region28: #{tpu_custom_call.1} parent=1 // pred_region
      %414 = dma.done [#allocation5], 128
    $region29: #{tpu_custom_call.1} parent=1 // pred_fallthru
      _
    // Predicated region
    $region30: #{tpu_custom_call.1} parent=1 // pred_check
      _
    $region31: #{tpu_custom_call.1} parent=1 // pred_check_branch
      %416 = sbr.rel (0) target = $region33
    $region32: #{tpu_custom_call.1} parent=1 // pred_region
      %417 = dma.done [#allocation8], 128
    $region33: #{tpu_custom_call.1} parent=1 // pred_fallthru
      _
    %418 = vsyncpa [#allocation4], 1
    %419 = vsyncpa [#allocation5], 1
    %420 = vsyncpa [#allocation8], 1

</llo_original>
